<compile_context>
chip_gen: v7x
topology: tpu7x:2x2x1
jax: 0.10.0
libtpu: 0.0.40
codegen_flags: <defaults>
</compile_context>

<pallas_src>
import functools

import jax
import jax.numpy as jnp
from jax.experimental import pallas as pl
from jax.experimental.pallas import tpu as pltpu

H1 = 64
H2 = 32
LANES = 128


def _round_up(n, m):
    return ((n + m - 1) // m) * m


def dqn_kernel(x_ref, p_ref, o_ref, *, offs, state_pad, action_size):
    w1_o, b1_o, w2_o, b2_o, w3_o, b3_o = offs
    dtype = p_ref.dtype

    x = x_ref[...].astype(dtype)

    # Static, 8-row-aligned slices of the packed parameter buffer (lane-dense).
    w1 = p_ref[w1_o:w1_o + state_pad, :]
    b1 = p_ref[b1_o:b1_o + 1, :].astype(jnp.float32)
    w2 = p_ref[w2_o:w2_o + LANES, :]
    b2 = p_ref[b2_o:b2_o + 1, :].astype(jnp.float32)
    w3 = p_ref[w3_o:w3_o + LANES, :]
    b3 = p_ref[b3_o:b3_o + 1, :].astype(jnp.float32)

    # fc1 + relu (MXU with f32 accumulation; element-wise work kept in f32).
    h1 = jnp.dot(x, w1, preferred_element_type=jnp.float32) + b1
    h1 = jnp.maximum(h1, 0.0).astype(dtype)
    # fc2 + relu
    h2 = jnp.dot(h1, w2, preferred_element_type=jnp.float32) + b2
    h2 = jnp.maximum(h2, 0.0).astype(dtype)
    # fc3 (no activation). Matmul stays 128-lane wide (free; MXU has huge
    # slack), but only the action_size useful lanes are written back to HBM.
    out = jnp.dot(h2, w3, preferred_element_type=jnp.float32) + b3
    o_ref[...] = out[:, :action_size].astype(o_ref.dtype)


def pack_dqn_params(params, state_size, action_size, dtype=jnp.float32):
    """Pack (w1,b1,w2,b2,w3,b3) into one lane-dense [rows, 128] buffer.

    Every segment starts on an 8-row (sublane-tile) boundary and is
    zero-padded to 128 lanes, so the kernel only takes aligned static slices.
    Zero-padded weight/bias lanes propagate zeros through ReLU, so results are
    unaffected. Returns (packed_buffer, static_offsets).
    """
    w1, b1, w2, b2, w3, b3 = params
    state_pad = _round_up(state_size, 8)

    w1_o = 0
    b1_o = w1_o + state_pad
    w2_o = b1_o + 8
    b2_o = w2_o + LANES
    w3_o = b2_o + 8
    b3_o = w3_o + LANES
    total = b3_o + 8

    buf = jnp.zeros((total, LANES), jnp.float32)
    buf = buf.at[w1_o:w1_o + state_size, :H1].set(w1.reshape(state_size, H1))
    buf = buf.at[b1_o, :H1].set(b1.reshape(H1))
    buf = buf.at[w2_o:w2_o + H1, :H2].set(w2.reshape(H1, H2))
    buf = buf.at[b2_o, :H2].set(b2.reshape(H2))
    buf = buf.at[w3_o:w3_o + H2, :action_size].set(w3.reshape(H2, action_size))
    buf = buf.at[b3_o, :action_size].set(b3.reshape(action_size))

    offs = (w1_o, b1_o, w2_o, b2_o, w3_o, b3_o)
    return buf.astype(dtype), offs


def dqn_forward(x, packed, offs, *, state_size, action_size, tile_b=4096):
    """Batch-tiled Pallas DQN forward. Returns [B, action_size] float32."""
    B = x.shape[0]
    state_pad = _round_up(state_size, 8)
    rows = packed.shape[0]

    # Tile size: as large as tile_b allows (amortizes ~0.35 us/grid-step), but
    # capped at ceil(B/2) so the grid has >= 2 steps whenever possible and
    # v7x's two TensorCores both get work under dimension_semantics=parallel.
    half_b = _round_up(pl.cdiv(max(B, 1), 2), 8)
    tb = max(8, min(_round_up(tile_b, 8), half_b))
    Bp = _round_up(B, tb)

    # Activations stored in the parameter dtype (bf16 halves HBM traffic on
    # all of v5e/v6e/v7x); pad batch and feature dims to the tile/sublane grid.
    x_p = x.astype(packed.dtype)
    if x_p.shape != (Bp, state_pad):
        x_p = jnp.pad(x_p, ((0, Bp - B), (0, state_pad - state_size)))

    kernel = functools.partial(dqn_kernel, offs=offs, state_pad=state_pad,
                               action_size=action_size)

    itemsize = jnp.dtype(packed.dtype).itemsize
    # Conservative VMEM estimate (lane-padded blocks, double buffers for the
    # pipelined operands, f32 intermediates). Explicit limit with headroom so
    # big batch tiles still fit v7x's 64 MiB physical VMEM (32 MiB scoped).
    vmem_est = (tb * LANES * itemsize * 2      # x blocks (double-buffered)
                + tb * LANES * 4 * 2           # out blocks (double-buffered)
                + tb * LANES * 4 * 3           # f32 h1/h2/logits live values
                + rows * LANES * itemsize)     # resident packed params
    vmem_limit = int(min(max(2 * vmem_est, 32 << 20), 56 << 20))

    flops = 2 * Bp * (state_pad * LANES + LANES * LANES + LANES * LANES)
    bytes_accessed = int(x_p.size * itemsize
                         + Bp * action_size * 4
                         + rows * LANES * itemsize)

    out = pl.pallas_call(
        kernel,
        out_shape=jax.ShapeDtypeStruct((Bp, action_size), jnp.float32),
        grid=(Bp // tb,),
        in_specs=[
            # Batch-tiled x, auto-pipelined (double-buffered) by BlockSpec.
            pl.BlockSpec((tb, state_pad), lambda i: (i, 0)),
            # Whole packed parameter buffer resident in VMEM: one DMA, one
            # buffer, no per-step revisit plumbing.
            pl.BlockSpec(memory_space=pltpu.MemorySpace.VMEM),
        ],
        # Narrow output block: last dim equals the full array dim, so only
        # action_size useful lanes are written back to HBM per row.
        out_specs=pl.BlockSpec((tb, action_size), lambda i: (i, 0)),
        compiler_params=pltpu.CompilerParams(
            dimension_semantics=("parallel",),
            vmem_limit_bytes=vmem_limit),
        cost_estimate=pl.CostEstimate(
            flops=flops, transcendentals=0, bytes_accessed=bytes_accessed),
    )(x_p, packed)

    return out[:B]


def init_dqn_params(key, state_size, action_size):
    """Deterministic init mimicking nn.Linear's U(-1/sqrt(fan_in), 1/sqrt(fan_in))."""
    def linear(key, fan_in, fan_out):
        kw, kb = jax.random.split(key)
        bound = 1.0 / jnp.sqrt(jnp.float32(fan_in))
        w = jax.random.uniform(kw, (fan_in, fan_out), jnp.float32, -bound, bound)
        b = jax.random.uniform(kb, (1, fan_out), jnp.float32, -bound, bound)
        return w, b

    k1, k2, k3 = jax.random.split(key, 3)
    w1, b1 = linear(k1, state_size, H1)
    w2, b2 = linear(k2, H1, H2)
    w3, b3 = linear(k3, H2, action_size)
    return (w1, b1, w2, b2, w3, b3)


def dqn_reference(x, params):
    """Pure-JAX reference (use this jitted for tiny online-inference batches)."""
    w1, b1, w2, b2, w3, b3 = params
    h1 = jnp.maximum(x @ w1 + b1, 0.0)
    h2 = jnp.maximum(h1 @ w2 + b2, 0.0)
    return h2 @ w3 + b3


if __name__ == "__main__":
    batch = 8
    state_size = 16
    action_size = 4

    key = jax.random.PRNGKey(0)
    k_params, k_x, k_xbig = jax.random.split(key, 3)
    params = init_dqn_params(k_params, state_size, action_size)
    x = jax.random.normal(k_x, (batch, state_size), jnp.float32)

    ref = dqn_reference(x, params)

    # f32 parameter storage: exact match with the reference.
    packed_f32, offs = pack_dqn_params(params, state_size, action_size, jnp.float32)
    out = dqn_forward(x, packed_f32, offs,
                      state_size=state_size, action_size=action_size)
    out = jax.block_until_ready(out)
    assert out.shape == (batch, action_size)
    assert jnp.allclose(out, ref, atol=1e-5, rtol=1e-5)

    # Multi-step grid path (exercises the v7x tile cap + resident params).
    x_big = jax.random.normal(k_xbig, (64, state_size), jnp.float32)
    ref_big = dqn_reference(x_big, params)
    out_big = jax.block_until_ready(
        dqn_forward(x_big, packed_f32, offs,
                    state_size=state_size, action_size=action_size))
    assert out_big.shape == (64, action_size)
    assert jnp.allclose(out_big, ref_big, atol=1e-5, rtol=1e-5)

    # bf16 parameter/activation storage (good on v5e/v6e/v7x): loose tolerance.
    packed_bf16, offs_b = pack_dqn_params(params, state_size, action_size, jnp.bfloat16)
    out_bf16 = jax.block_until_ready(
        dqn_forward(x, packed_bf16, offs_b,
                    state_size=state_size, action_size=action_size))
    assert out_bf16.shape == (batch, action_size)
    assert jnp.allclose(out_bf16, ref, atol=5e-2, rtol=5e-2)

    print("KERNEL_OK")
</pallas_src>

<mosaic_0001>
module attributes {stable_mosaic.version = 11 : i64} {
  func.func @dqn_kernel(%arg0: i32, %arg1: memref<8x16xf32, #tpu.memory_space<vmem>>, %arg2: memref<296x128xf32, #tpu.memory_space<vmem>>, %arg3: memref<8x4xf32, #tpu.memory_space<vmem>>) attributes {dimension_semantics = [#tpu.dimension_semantics<parallel>], iteration_bounds = array<i64: 1>, scalar_prefetch = 0 : i64, scratch_operands = 0 : i64, tpu.core_type = #tpu.core_type<tc>, window_params = [{transform_indices = @transform_0, window_bounds = array<i64: 8, 16>}, {pipeline_mode = #tpu.pipeline_mode<synchronous>, transform_indices = @transform_1, window_bounds = array<i64: 296, 128>}, {transform_indices = @transform_2, window_bounds = array<i64: 8, 4>}]} {
    %c0 = arith.constant 0 : index
    %c0_0 = arith.constant 0 : index
    %0 = vector.load %arg1[%c0, %c0_0] : memref<8x16xf32, #tpu.memory_space<vmem>>, vector<8x16xf32>
    %c0_1 = arith.constant 0 : index
    %c0_2 = arith.constant 0 : index
    %1 = vector.load %arg2[%c0_1, %c0_2] : memref<296x128xf32, #tpu.memory_space<vmem>>, vector<16x128xf32>
    %c16 = arith.constant 16 : index
    %c0_3 = arith.constant 0 : index
    %2 = vector.load %arg2[%c16, %c0_3] : memref<296x128xf32, #tpu.memory_space<vmem>>, vector<1x128xf32>
    %c24 = arith.constant 24 : index
    %c0_4 = arith.constant 0 : index
    %3 = vector.load %arg2[%c24, %c0_4] : memref<296x128xf32, #tpu.memory_space<vmem>>, vector<128x128xf32>
    %c152 = arith.constant 152 : index
    %c0_5 = arith.constant 0 : index
    %4 = vector.load %arg2[%c152, %c0_5] : memref<296x128xf32, #tpu.memory_space<vmem>>, vector<1x128xf32>
    %c160 = arith.constant 160 : index
    %c0_6 = arith.constant 0 : index
    %5 = vector.load %arg2[%c160, %c0_6] : memref<296x128xf32, #tpu.memory_space<vmem>>, vector<128x128xf32>
    %c288 = arith.constant 288 : index
    %c0_7 = arith.constant 0 : index
    %6 = vector.load %arg2[%c288, %c0_7] : memref<296x128xf32, #tpu.memory_space<vmem>>, vector<1x128xf32>
    %cst = arith.constant dense<0.000000e+00> : vector<8x128xf32>
    %7 = tpu.matmul %0, %1, %cst {dimension_numbers = #tpu.dot_dimension_numbers<[1], [0], [0], [1], [0, 0, 1, 1], [], []>} : vector<8x16xf32>, vector<16x128xf32>, vector<8x128xf32> -> vector<8x128xf32>
    %8 = vector.broadcast %2 : vector<1x128xf32> to vector<8x128xf32>
    %9 = arith.addf %7, %8 : vector<8x128xf32>
    %cst_8 = arith.constant 0.000000e+00 : f32
    %10 = vector.broadcast %cst_8 : f32 to vector<8x128xf32>
    %11 = arith.maximumf %9, %10 : vector<8x128xf32>
    %cst_9 = arith.constant dense<0.000000e+00> : vector<8x128xf32>
    %12 = tpu.matmul %11, %3, %cst_9 {dimension_numbers = #tpu.dot_dimension_numbers<[1], [0], [0], [1], [0, 0, 1, 1], [], []>} : vector<8x128xf32>, vector<128x128xf32>, vector<8x128xf32> -> vector<8x128xf32>
    %13 = vector.broadcast %4 : vector<1x128xf32> to vector<8x128xf32>
    %14 = arith.addf %12, %13 : vector<8x128xf32>
    %cst_10 = arith.constant 0.000000e+00 : f32
    %15 = vector.broadcast %cst_10 : f32 to vector<8x128xf32>
    %16 = arith.maximumf %14, %15 : vector<8x128xf32>
    %cst_11 = arith.constant dense<0.000000e+00> : vector<8x128xf32>
    %17 = tpu.matmul %16, %5, %cst_11 {dimension_numbers = #tpu.dot_dimension_numbers<[1], [0], [0], [1], [0, 0, 1, 1], [], []>} : vector<8x128xf32>, vector<128x128xf32>, vector<8x128xf32> -> vector<8x128xf32>
    %18 = vector.broadcast %6 : vector<1x128xf32> to vector<8x128xf32>
    %19 = arith.addf %17, %18 : vector<8x128xf32>
    %20 = vector.extract_strided_slice %19 {offsets = [0, 0], sizes = [8, 4], strides = [1, 1]} : vector<8x128xf32> to vector<8x4xf32>
    %c0_12 = arith.constant 0 : index
    %c0_13 = arith.constant 0 : index
    %21 = vector.load %arg3[%c0_12, %c0_13] : memref<8x4xf32, #tpu.memory_space<vmem>>, vector<8x4xf32>
    tpu.vector_store %arg3[%c0_12, %c0_13], %20 {strides = array<i32>} : memref<8x4xf32, #tpu.memory_space<vmem>>, vector<8x4xf32>,
    return
  }
  func.func @transform_0(%arg0: i32) -> (i32, i32) {
    %c0_i32 = arith.constant 0 : i32
    %c0_i32_0 = arith.constant 0 : i32
    return %arg0, %c0_i32 : i32, i32
  }
  func.func @transform_1(%arg0: i32) -> (i32, i32) {
    %c0_i32 = arith.constant 0 : i32
    %c0_i32_0 = arith.constant 0 : i32
    %c0_i32_1 = arith.constant 0 : i32
    return %c0_i32, %c0_i32_0 : i32, i32
  }
  func.func @transform_2(%arg0: i32) -> (i32, i32) {
    %c0_i32 = arith.constant 0 : i32
    %c0_i32_0 = arith.constant 0 : i32
    return %arg0, %c0_i32 : i32, i32
  }
}

</mosaic_0001>

<llo_original>
// kernel: tpu_custom_call.1
$region0: #{tpu_custom_call.1}
  #allocation0 [shape = 'u32[]', space=smem, size = 0x4, offset = 0x4, fixed_abs, tag = 'smem constant byte address 0x4 - core index']
  #allocation1 [shape = 'u32[144,128]{1,0:T(1,128)}', space=vmem, size = 0x12000, scoped, tag = 'internal scratch']
  %s0 = inlined_call_operand.hbm [shape: f32[8,16], index: 0, kind: input, shape index: {}]
  %s1 = inlined_call_operand.hbm [shape: f32[296,128], index: 1, kind: input, shape index: {}]
  %s2 = inlined_call_operand.vmem [shape: f32[8,4], index: 2, kind: output, shape index: {}]
  %s3 = sld [smem:[#allocation0]]
  $region26: #{tpu_custom_call.1} parent=0
    _
  %s5 = ssub.s32 1, %s3
  %s6 = scalar_select 0, %s5, %s3
  $region1: #{tpu_custom_call.1} parent=0
    #allocation2 [shape = 'u8[4096]{0}', space=vmem, size = 0x1000, scoped, tag = 'input window, operand 0, single buffered']
    #allocation3 [shape = 's32[1]{0}', space=sflag, size = 0x4, scoped, tag = 'scoped memory for tpu_custom_call.1']
    #allocation4 [shape = 'u8[151552]{0}', space=vmem, size = 0x25000, scoped, tag = 'input window, operand 1, single buffered']
    #allocation5 [shape = 's32[1]{0}', space=sflag, size = 0x4, scoped, tag = 'scoped memory for tpu_custom_call.1']
    %7 = vsyncpa [#allocation3], 0
    %8 = vsyncpa [#allocation5], 0
    // Predicated region
    $region2: #{tpu_custom_call.1} parent=1 // pred_check
      _
    $region3: #{tpu_custom_call.1} parent=1 // pred_check_branch
      %10 = sbr.rel (0) target = $region5
    $region4: #{tpu_custom_call.1} parent=1 // pred_region
      %s12 = ssub.s32 128, 128
      %13 = vsyncadd [#allocation3], %s12
      %s15 = sshll.u32 [#allocation2], 4
      %s16 = int_to_ptr.vmem [resolvable:$true] %s15
      %18 = dma.hbm_to_vmem [thread:$0]  %s0, 128, %s16, [#allocation3]
    $region5: #{tpu_custom_call.1} parent=1 // pred_fallthru
      _
    // Predicated region
    $region6: #{tpu_custom_call.1} parent=1 // pred_check
      _
    $region7: #{tpu_custom_call.1} parent=1 // pred_check_branch
      %20 = sbr.rel (0) target = $region9
    $region8: #{tpu_custom_call.1} parent=1 // pred_region
      %s22 = ssub.s32 4736, 4736
      %23 = vsyncadd [#allocation5], %s22
      %s24 = sshll.u32 [#allocation4], 4
      %s25 = int_to_ptr.vmem [resolvable:$true] %s24
      %30 = dma.hbm_to_vmem [thread:$0]  %s1, 4736, %s25, [#allocation5], 128, 128, 8
    $region9: #{tpu_custom_call.1} parent=1 // pred_fallthru
      _
    // Predicated region
    $region10: #{tpu_custom_call.1} parent=1 // pred_check
      _
    $region11: #{tpu_custom_call.1} parent=1 // pred_check_branch
      %32 = sbr.rel (0) target = $region13
    $region12: #{tpu_custom_call.1} parent=1 // pred_region
      %33 = dma.done [#allocation3], 128
    $region13: #{tpu_custom_call.1} parent=1 // pred_fallthru
      _
    // Predicated region
    $region14: #{tpu_custom_call.1} parent=1 // pred_check
      _
    $region15: #{tpu_custom_call.1} parent=1 // pred_check_branch
      %35 = sbr.rel (0) target = $region17
    $region16: #{tpu_custom_call.1} parent=1 // pred_region
      %36 = dma.done [#allocation5], 4736
    $region17: #{tpu_custom_call.1} parent=1 // pred_fallthru
      _
    %v37 = vld [vmem:[#allocation2] sm:$0xff]
    %v38 = vld [vmem:[#allocation4] sm:$0xff]
    %v39 = vld [vmem:[#allocation4 + $0x8] sm:$0xff]
    %v40 = vld [vmem:[#allocation4 + $0x10] sm:$0x1]
    %v41 = vld [vmem:[#allocation4 + $0x18] sm:$0xff]
    %v42 = vld [vmem:[#allocation4 + $0x20] sm:$0xff]
    %v43 = vld [vmem:[#allocation4 + $0x28] sm:$0xff]
    %v44 = vld [vmem:[#allocation4 + $0x30] sm:$0xff]
    %v45 = vld [vmem:[#allocation4 + $0x38] sm:$0xff]
    %v46 = vld [vmem:[#allocation4 + $0x40] sm:$0xff]
    %v47 = vld [vmem:[#allocation4 + $0x48] sm:$0xff]
    %v48 = vld [vmem:[#allocation4 + $0x50] sm:$0xff]
    %v49 = vld [vmem:[#allocation4 + $0x58] sm:$0xff]
    %v50 = vld [vmem:[#allocation4 + $0x60] sm:$0xff]
    %v51 = vld [vmem:[#allocation4 + $0x68] sm:$0xff]
    %v52 = vld [vmem:[#allocation4 + $0x70] sm:$0xff]
    %v53 = vld [vmem:[#allocation4 + $0x78] sm:$0xff]
    %v54 = vld [vmem:[#allocation4 + $0x80] sm:$0xff]
    %v55 = vld [vmem:[#allocation4 + $0x88] sm:$0xff]
    %v56 = vld [vmem:[#allocation4 + $0x90] sm:$0xff]
    %v57 = vld [vmem:[#allocation4 + $0x98] sm:$0x1]
    %v58 = vld [vmem:[#allocation4 + $0xa0] sm:$0xff]
    %v59 = vld [vmem:[#allocation4 + $0xa8] sm:$0xff]
    %v60 = vld [vmem:[#allocation4 + $0xb0] sm:$0xff]
    %v61 = vld [vmem:[#allocation4 + $0xb8] sm:$0xff]
    %v62 = vld [vmem:[#allocation4 + $0xc0] sm:$0xff]
    %v63 = vld [vmem:[#allocation4 + $0xc8] sm:$0xff]
    %v64 = vld [vmem:[#allocation4 + $0xd0] sm:$0xff]
    %v65 = vld [vmem:[#allocation4 + $0xd8] sm:$0xff]
    %v66 = vld [vmem:[#allocation4 + $0xe0] sm:$0xff]
    %v67 = vld [vmem:[#allocation4 + $0xe8] sm:$0xff]
    %v68 = vld [vmem:[#allocation4 + $0xf0] sm:$0xff]
    %v69 = vld [vmem:[#allocation4 + $0xf8] sm:$0xff]
    %v70 = vld [vmem:[#allocation4 + $0x100] sm:$0xff]
    %v71 = vld [vmem:[#allocation4 + $0x108] sm:$0xff]
    %v72 = vld [vmem:[#allocation4 + $0x110] sm:$0xff]
    %v73 = vld [vmem:[#allocation4 + $0x118] sm:$0xff]
    %v74 = vld [vmem:[#allocation4 + $0x120] sm:$0x1]
    %v75 = vlaneseq
    %v76 = vshrl.u32 %v75, 7
    %v77 = vsub.s32 0, %v76
    %v78 = vrot.slane %v40, %v77
    %vm79 = vcmask 130048
    %v81 = vsel %vm79, %v37, 0
    %83 = vmatprep.subr.mxu0 0.0
    %84 = vmatpush1.msra.mxu0 %v38
    %85 = vmatprep.subr.mxu0 0.0
    %86 = vmatpush1.msra.mxu0 %v39
    %87 = vmatprep.subr.mxu0 0.0
    %88 = vmatpush1.msra.mxu0 0.0
    %89 = vmatprep.subr.mxu0 0.0
    %90 = vmatpush1.msra.mxu0 0.0
    %91 = vmatprep.subr.mxu0 0.0
    %92 = vmatpush1.msra.mxu0 0.0
    %93 = vmatprep.subr.mxu0 0.0
    %94 = vmatpush1.msra.mxu0 0.0
    %95 = vmatprep.subr.mxu0 0.0
    %96 = vmatpush1.msra.mxu0 0.0
    %97 = vmatprep.subr.mxu0 0.0
    %98 = vmatpush1.msra.mxu0 0.0
    %99 = vmatprep.subr.mxu0 0.0
    %100 = vmatpush1.msra.mxu0 0.0
    %101 = vmatprep.subr.mxu0 0.0
    %102 = vmatpush1.msra.mxu0 0.0
    %103 = vmatprep.subr.mxu0 0.0
    %104 = vmatpush1.msra.mxu0 0.0
    %105 = vmatprep.subr.mxu0 0.0
    %106 = vmatpush1.msra.mxu0 0.0
    %107 = vmatprep.subr.mxu0 0.0
    %108 = vmatpush1.msra.mxu0 0.0
    %109 = vmatprep.subr.mxu0 0.0
    %110 = vmatpush1.msra.mxu0 0.0
    %111 = vmatprep.subr.mxu0 0.0
    %112 = vmatpush1.msra.mxu0 0.0
    %113 = vmatprep.subr.mxu0 0.0
    %114 = vmatpush1.msra.mxu0 0.0
    %115 = vmatprep.subr.mxu0 0.0
    %116 = vmatpush1.msra.mxu0 0.0
    %117 = vmatprep.subr.mxu0 0.0
    %118 = vmatpush1.msra.mxu0 0.0
    %119 = vmatprep.subr.mxu0 0.0
    %120 = vmatpush1.msra.mxu0 0.0
    %121 = vmatprep.subr.mxu0 0.0
    %122 = vmatpush1.msra.mxu0 0.0
    %123 = vmatprep.subr.mxu0 0.0
    %124 = vmatpush1.msra.mxu0 0.0
    %125 = vmatprep.subr.mxu0 0.0
    %126 = vmatpush1.msra.mxu0 0.0
    %127 = vmatprep.subr.mxu0 0.0
    %128 = vmatpush1.msra.mxu0 0.0
    %129 = vmatprep.subr.mxu0 0.0
    %130 = vmatpush1.msra.mxu0 0.0
    %131 = vmatprep.subr.mxu0 0.0
    %132 = vmatpush1.msra.mxu0 0.0
    %133 = vmatprep.subr.mxu0 0.0
    %134 = vmatpush1.msra.mxu0 0.0
    %135 = vmatprep.subr.mxu0 0.0
    %136 = vmatpush1.msra.mxu0 0.0
    %137 = vmatprep.subr.mxu0 0.0
    %138 = vmatpush1.msra.mxu0 0.0
    %139 = vmatprep.subr.mxu0 0.0
    %140 = vmatpush1.msra.mxu0 0.0
    %141 = vmatprep.subr.mxu0 0.0
    %142 = vmatpush1.msra.mxu0 0.0
    %143 = vmatprep.subr.mxu0 0.0
    %144 = vmatpush1.msra.mxu0 0.0
    %145 = vmatprep.subr.mxu0 0.0
    %146 = vmatpush1.msra.mxu0 0.0
    %147 = vmatprep.mubr.f32.mxu0 0.0
    %148 = vmatmul.mubr.f32.gmra.mrb[0].mxu0 %v81
    %v149 = vpop.f32.mrb[0].mxu0
    %v150 = vadd.f32 %v78, %v149
    %v151 = vpop.f32.mrb[0].mxu0
    %152 = vdwg.mxu0
    %v153 = vmax.f32 %v150, 0.0
    %v154 = vlaneseq
    %v155 = vshrl.u32 %v154, 7
    %v156 = vsub.s32 0, %v155
    %v157 = vrot.slane %v57, %v156
    %158 = vmatprep.subr.mxu0 0.0
    %159 = vmatpush1.msra.mxu0 %v41
    %160 = vmatprep.subr.mxu0 0.0
    %161 = vmatpush1.msra.mxu0 %v42
    %162 = vmatprep.subr.mxu0 0.0
    %163 = vmatpush1.msra.mxu0 %v43
    %164 = vmatprep.subr.mxu0 0.0
    %165 = vmatpush1.msra.mxu0 %v44
    %166 = vmatprep.subr.mxu0 0.0
    %167 = vmatpush1.msra.mxu0 %v45
    %168 = vmatprep.subr.mxu0 0.0
    %169 = vmatpush1.msra.mxu0 %v46
    %170 = vmatprep.subr.mxu0 0.0
    %171 = vmatpush1.msra.mxu0 %v47
    %172 = vmatprep.subr.mxu0 0.0
    %173 = vmatpush1.msra.mxu0 %v48
    %174 = vmatprep.subr.mxu0 0.0
    %175 = vmatpush1.msra.mxu0 %v49
    %176 = vmatprep.subr.mxu0 0.0
    %177 = vmatpush1.msra.mxu0 %v50
    %178 = vmatprep.subr.mxu0 0.0
    %179 = vmatpush1.msra.mxu0 %v51
    %180 = vmatprep.subr.mxu0 0.0
    %181 = vmatpush1.msra.mxu0 %v52
    %182 = vmatprep.subr.mxu0 0.0
    %183 = vmatpush1.msra.mxu0 %v53
    %184 = vmatprep.subr.mxu0 0.0
    %185 = vmatpush1.msra.mxu0 %v54
    %186 = vmatprep.subr.mxu0 0.0
    %187 = vmatpush1.msra.mxu0 %v55
    %188 = vmatprep.subr.mxu0 0.0
    %189 = vmatpush1.msra.mxu0 %v56
    %190 = vmatprep.subr.mxu0 0.0
    %191 = vmatpush1.msra.mxu0 0.0
    %192 = vmatprep.subr.mxu0 0.0
    %193 = vmatpush1.msra.mxu0 0.0
    %194 = vmatprep.subr.mxu0 0.0
    %195 = vmatpush1.msra.mxu0 0.0
    %196 = vmatprep.subr.mxu0 0.0
    %197 = vmatpush1.msra.mxu0 0.0
    %198 = vmatprep.subr.mxu0 0.0
    %199 = vmatpush1.msra.mxu0 0.0
    %200 = vmatprep.subr.mxu0 0.0
    %201 = vmatpush1.msra.mxu0 0.0
    %202 = vmatprep.subr.mxu0 0.0
    %203 = vmatpush1.msra.mxu0 0.0
    %204 = vmatprep.subr.mxu0 0.0
    %205 = vmatpush1.msra.mxu0 0.0
    %206 = vmatprep.subr.mxu0 0.0
    %207 = vmatpush1.msra.mxu0 0.0
    %208 = vmatprep.subr.mxu0 0.0
    %209 = vmatpush1.msra.mxu0 0.0
    %210 = vmatprep.subr.mxu0 0.0
    %211 = vmatpush1.msra.mxu0 0.0
    %212 = vmatprep.subr.mxu0 0.0
    %213 = vmatpush1.msra.mxu0 0.0
    %214 = vmatprep.subr.mxu0 0.0
    %215 = vmatpush1.msra.mxu0 0.0
    %216 = vmatprep.subr.mxu0 0.0
    %217 = vmatpush1.msra.mxu0 0.0
    %218 = vmatprep.subr.mxu0 0.0
    %219 = vmatpush1.msra.mxu0 0.0
    %220 = vmatprep.subr.mxu0 0.0
    %221 = vmatpush1.msra.mxu0 0.0
    %222 = vmatprep.mubr.f32.mxu0 0.0
    %223 = vmatmul.mubr.f32.gmra.mrb[0].mxu0 %v153
    %v224 = vpop.f32.mrb[0].mxu0
    %v225 = vadd.f32 %v157, %v224
    %v226 = vpop.f32.mrb[0].mxu0
    %227 = vdwg.mxu0
    %v228 = vmax.f32 %v225, 0.0
    %v229 = vlaneseq
    %v230 = vshrl.u32 %v229, 7
    %v231 = vsub.s32 0, %v230
    %v232 = vrot.slane %v74, %v231
    %233 = vmatprep.subr.mxu0 0.0
    %234 = vmatpush1.msra.mxu0 %v58
    %235 = vmatprep.subr.mxu0 0.0
    %236 = vmatpush1.msra.mxu0 %v59
    %237 = vmatprep.subr.mxu0 0.0
    %238 = vmatpush1.msra.mxu0 %v60
    %239 = vmatprep.subr.mxu0 0.0
    %240 = vmatpush1.msra.mxu0 %v61
    %241 = vmatprep.subr.mxu0 0.0
    %242 = vmatpush1.msra.mxu0 %v62
    %243 = vmatprep.subr.mxu0 0.0
    %244 = vmatpush1.msra.mxu0 %v63
    %245 = vmatprep.subr.mxu0 0.0
    %246 = vmatpush1.msra.mxu0 %v64
    %247 = vmatprep.subr.mxu0 0.0
    %248 = vmatpush1.msra.mxu0 %v65
    %249 = vmatprep.subr.mxu0 0.0
    %250 = vmatpush1.msra.mxu0 %v66
    %251 = vmatprep.subr.mxu0 0.0
    %252 = vmatpush1.msra.mxu0 %v67
    %253 = vmatprep.subr.mxu0 0.0
    %254 = vmatpush1.msra.mxu0 %v68
    %255 = vmatprep.subr.mxu0 0.0
    %256 = vmatpush1.msra.mxu0 %v69
    %257 = vmatprep.subr.mxu0 0.0
    %258 = vmatpush1.msra.mxu0 %v70
    %259 = vmatprep.subr.mxu0 0.0
    %260 = vmatpush1.msra.mxu0 %v71
    %261 = vmatprep.subr.mxu0 0.0
    %262 = vmatpush1.msra.mxu0 %v72
    %263 = vmatprep.subr.mxu0 0.0
    %264 = vmatpush1.msra.mxu0 %v73
    %265 = vmatprep.subr.mxu0 0.0
    %266 = vmatpush1.msra.mxu0 0.0
    %267 = vmatprep.subr.mxu0 0.0
    %268 = vmatpush1.msra.mxu0 0.0
    %269 = vmatprep.subr.mxu0 0.0
    %270 = vmatpush1.msra.mxu0 0.0
    %271 = vmatprep.subr.mxu0 0.0
    %272 = vmatpush1.msra.mxu0 0.0
    %273 = vmatprep.subr.mxu0 0.0
    %274 = vmatpush1.msra.mxu0 0.0
    %275 = vmatprep.subr.mxu0 0.0
    %276 = vmatpush1.msra.mxu0 0.0
    %277 = vmatprep.subr.mxu0 0.0
    %278 = vmatpush1.msra.mxu0 0.0
    %279 = vmatprep.subr.mxu0 0.0
    %280 = vmatpush1.msra.mxu0 0.0
    %281 = vmatprep.subr.mxu0 0.0
    %282 = vmatpush1.msra.mxu0 0.0
    %283 = vmatprep.subr.mxu0 0.0
    %284 = vmatpush1.msra.mxu0 0.0
    %285 = vmatprep.subr.mxu0 0.0
    %286 = vmatpush1.msra.mxu0 0.0
    %287 = vmatprep.subr.mxu0 0.0
    %288 = vmatpush1.msra.mxu0 0.0
    %289 = vmatprep.subr.mxu0 0.0
    %290 = vmatpush1.msra.mxu0 0.0
    %291 = vmatprep.subr.mxu0 0.0
    %292 = vmatpush1.msra.mxu0 0.0
    %293 = vmatprep.subr.mxu0 0.0
    %294 = vmatpush1.msra.mxu0 0.0
    %295 = vmatprep.subr.mxu0 0.0
    %296 = vmatpush1.msra.mxu0 0.0
    %297 = vmatprep.mubr.f32.mxu0 0.0
    %298 = vmatmul.mubr.f32.gmra.mrb[0].mxu0 %v228
    %v299 = vpop.f32.mrb[0].mxu0
    %v300 = vadd.f32 %v232, %v299
    %v301 = vpop.f32.mrb[0].mxu0
    %302 = vdwg.mxu0
    %vm303 = vcmask 31744
    %304 = vst.msk [vmem:[%s2] sm:$0xff] %vm303, %v300
    // Predicated region
    $region18: #{tpu_custom_call.1} parent=1 // pred_check
      _
    $region19: #{tpu_custom_call.1} parent=1 // pred_check_branch
      %306 = sbr.rel (0) target = $region21
    $region20: #{tpu_custom_call.1} parent=1 // pred_region
      _
    $region21: #{tpu_custom_call.1} parent=1 // pred_fallthru
      _
    // Predicated region
    $region22: #{tpu_custom_call.1} parent=1 // pred_check
      _
    $region23: #{tpu_custom_call.1} parent=1 // pred_check_branch
      %308 = sbr.rel (0) target = $region25
    $region24: #{tpu_custom_call.1} parent=1 // pred_region
      _
    $region25: #{tpu_custom_call.1} parent=1 // pred_fallthru
      _
    %309 = vsyncpa [#allocation3], 1
    %310 = vsyncpa [#allocation5], 1

</llo_original>
